<compile_context>
chip_gen: v6e
topology: v6e:2x2x1
jax: 0.10.0
libtpu: 0.0.40
codegen_flags: <defaults>
</compile_context>

<pallas_src>
import functools

import jax
import jax.numpy as jnp
from jax import lax
from jax.experimental import pallas as pl
from jax.experimental.pallas import tpu as pltpu

input_size = 4
num_classes = 2
HIDDEN = 20


def _round_up(x, m):
    return (x + m - 1) // m * m


def _choose_tile(batch, *, max_block=2048, target_steps=8):
    """Batch tile: ~batch/target_steps rounded to 128, clamped to [128, max_block].
    Guarantees multiple grid steps for v7x megacore + pipelining and bounds
    zero-padding waste (worst case < one tile beyond the 128-rounding)."""
    b128 = _round_up(batch, 128)
    tb = _round_up(pl.cdiv(b128, target_steps), 128)
    return max(128, min(tb, _round_up(max_block, 128)))


def _mlp_kernel(x_ref,
                w1_ref, b1_ref,
                w2_ref, b2_ref,
                w3_ref, b3_ref,
                w4_ref, b4_ref,
                w5_ref, b5_ref,
                o_ref, *, dot_dtype):
    # x_ref : [TB, input_size]      (natural row-major batch block)
    # wN_ref: [out, in]  (PyTorch order)   bN_ref: [out, 1] f32
    # o_ref : [num_classes, TB]     (batch on the 128-lane axis -> unmasked vst)
    x = x_ref[...].astype(dot_dtype)
    w1 = w1_ref[...].astype(dot_dtype)
    # Layer 1: contract the feature axis of both operands -> [HIDDEN, TB];
    # batch lands on the lane axis with no explicit transpose.
    acc = lax.dot_general(w1, x, (((1,), (1,)), ((), ())),
                          preferred_element_type=jnp.float32)
    h = jnp.maximum(acc + b1_ref[...], 0.0)                      # f32 epilogue
    for w_ref, b_ref in ((w2_ref, b2_ref), (w3_ref, b3_ref), (w4_ref, b4_ref)):
        w = w_ref[...].astype(dot_dtype)
        acc = jnp.dot(w, h.astype(dot_dtype),
                      preferred_element_type=jnp.float32)
        h = jnp.maximum(acc + b_ref[...], 0.0)                   # f32 epilogue
    w5 = w5_ref[...].astype(dot_dtype)
    o_ref[...] = (jnp.dot(w5, h.astype(dot_dtype),
                          preferred_element_type=jnp.float32) + b5_ref[...])


@functools.partial(
    jax.jit,
    static_argnames=("dot_dtype", "max_block", "target_steps", "batch_major_out"))
def mlp_forward(x, params, *, dot_dtype=jnp.bfloat16, max_block=2048,
                target_steps=8, batch_major_out=True):
    """x: [B, input_size] (f32 or bf16). params: (w1, b1, ..., w5, b5) with
    weights [out, in] (PyTorch order) and biases [out, 1] f32.
    Returns [B, num_classes] f32 (or [num_classes, B] if batch_major_out=False,
    which skips the final relayout pass)."""
    B = x.shape[0]
    tb = _choose_tile(B, max_block=max_block, target_steps=target_steps)
    grid = (pl.cdiv(B, tb),)

    x_spec = pl.BlockSpec((tb, input_size), lambda i: (i, 0))
    # Constant index_map -> parameter tiles stay VMEM-resident across steps.
    param_specs = [pl.BlockSpec(p.shape, lambda i: (0, 0)) for p in params]
    out_spec = pl.BlockSpec((num_classes, tb), lambda i: (0, i))

    out = pl.pallas_call(
        functools.partial(_mlp_kernel, dot_dtype=dot_dtype),
        grid=grid,
        out_shape=jax.ShapeDtypeStruct((num_classes, B), jnp.float32),
        in_specs=[x_spec] + param_specs,
        out_specs=out_spec,
        compiler_params=pltpu.CompilerParams(
            dimension_semantics=("parallel",)),   # megacore sharding on v7x
    )(x, *params)
    return out.T if batch_major_out else out


def nn_forward(x, params, *, min_pallas_batch=256, **kwargs):
    """Auto-dispatch: tiny batches are cheaper through plain XLA fusion."""
    if x.shape[0] < min_pallas_batch:
        return reference_forward(x, params)
    return mlp_forward(x, params, **kwargs)


def _init_linear(key, fan_in, fan_out):
    """nn.Linear-style init (uniform +-1/sqrt(fan_in)).
    Weight stays in PyTorch [out, in] order; bias is [out, 1]."""
    kw, kb = jax.random.split(key)
    bound = 1.0 / jnp.sqrt(fan_in)
    w = jax.random.uniform(kw, (fan_out, fan_in), jnp.float32, -bound, bound)
    b = jax.random.uniform(kb, (fan_out, 1), jnp.float32, -bound, bound)
    return w, b


def init_params(key):
    keys = jax.random.split(key, 5)
    dims = [(input_size, HIDDEN), (HIDDEN, HIDDEN), (HIDDEN, HIDDEN),
            (HIDDEN, HIDDEN), (HIDDEN, num_classes)]
    params = []
    for k, (fi, fo) in zip(keys, dims):
        w, b = _init_linear(k, fi, fo)
        params.extend([w, b])
    return tuple(params)


def cast_params_for_bandwidth(params, dtype=jnp.bfloat16):
    """Cast weights to `dtype` (HBM-bandwidth win, most valuable on v5e);
    keep biases f32 so the per-layer epilogues stay on the f32 accumulator."""
    return tuple(p.astype(dtype) if i % 2 == 0 else p
                 for i, p in enumerate(params))


def reference_forward(x, params, dot_dtype=None):
    """Pure-JAX reference matching the PyTorch forward. If `dot_dtype` is set,
    matmul operands are cast to it (f32 accumulation), mirroring the kernel."""
    def cast(a):
        return a if dot_dtype is None else a.astype(dot_dtype)
    w1, b1, w2, b2, w3, b3, w4, b4, w5, b5 = params
    h = x.astype(jnp.float32)
    for w, b in ((w1, b1), (w2, b2), (w3, b3), (w4, b4)):
        acc = jnp.dot(cast(h), cast(w).T, preferred_element_type=jnp.float32)
        h = jnp.maximum(acc + b.astype(jnp.float32).T, 0.0)
    return (jnp.dot(cast(h), cast(w5).T, preferred_element_type=jnp.float32)
            + b5.astype(jnp.float32).T)


if __name__ == "__main__":
    key = jax.random.PRNGKey(0)
    kx, kp = jax.random.split(key)

    B = 200  # not a multiple of 128 -> exercises the partial boundary block
    x = jax.random.normal(kx, (B, input_size), jnp.float32)
    params = init_params(kp)

    # Default path: bf16 MXU operands, f32 accumulation + epilogues.
    out = jax.block_until_ready(mlp_forward(x, params))
    ref_bf16 = reference_forward(x, params, dot_dtype=jnp.bfloat16)
    ref_f32 = reference_forward(x, params)
    assert out.shape == (B, num_classes), out.shape
    assert jnp.allclose(out, ref_bf16, atol=1e-2, rtol=1e-2), \
        "mismatch vs bf16-dot reference"
    assert jnp.allclose(out, ref_f32, atol=5e-2, rtol=5e-2), \
        "mismatch vs f32 reference"

    # Bandwidth-lean path: bf16 x and bf16 weights (f32 biases / epilogues).
    x_b = x.astype(jnp.bfloat16)
    params_b = cast_params_for_bandwidth(params)
    out_b = jax.block_until_ready(mlp_forward(x_b, params_b))
    ref_b = reference_forward(x_b, params_b, dot_dtype=jnp.bfloat16)
    assert out_b.shape == (B, num_classes), out_b.shape
    assert jnp.allclose(out_b, ref_b, atol=1e-2, rtol=1e-2), \
        "bf16-param mismatch vs reference"

    # Tiny batches route through plain XLA fusion.
    out_small = jax.block_until_ready(nn_forward(x[:8], params))
    assert out_small.shape == (8, num_classes), out_small.shape

    print("KERNEL_OK")
</pallas_src>

<mosaic_0001>
module attributes {stable_mosaic.version = 11 : i64} {
  func.func @_mlp_kernel(%arg0: i32, %arg1: memref<128x4xf32, #tpu.memory_space<vmem>>, %arg2: memref<20x4xf32, #tpu.memory_space<vmem>>, %arg3: memref<20x1xf32, #tpu.memory_space<vmem>>, %arg4: memref<20x20xf32, #tpu.memory_space<vmem>>, %arg5: memref<20x1xf32, #tpu.memory_space<vmem>>, %arg6: memref<20x20xf32, #tpu.memory_space<vmem>>, %arg7: memref<20x1xf32, #tpu.memory_space<vmem>>, %arg8: memref<20x20xf32, #tpu.memory_space<vmem>>, %arg9: memref<20x1xf32, #tpu.memory_space<vmem>>, %arg10: memref<2x20xf32, #tpu.memory_space<vmem>>, %arg11: memref<2x1xf32, #tpu.memory_space<vmem>>, %arg12: memref<2x128xf32, #tpu.memory_space<vmem>>) attributes {dimension_semantics = [#tpu.dimension_semantics<parallel>], iteration_bounds = array<i64: 2>, scalar_prefetch = 0 : i64, scratch_operands = 0 : i64, tpu.core_type = #tpu.core_type<tc>, window_params = [{transform_indices = @transform_0, window_bounds = array<i64: 128, 4>}, {pipeline_mode = #tpu.pipeline_mode<synchronous>, transform_indices = @transform_1, window_bounds = array<i64: 20, 4>}, {pipeline_mode = #tpu.pipeline_mode<synchronous>, transform_indices = @transform_2, window_bounds = array<i64: 20, 1>}, {pipeline_mode = #tpu.pipeline_mode<synchronous>, transform_indices = @transform_3, window_bounds = array<i64: 20, 20>}, {pipeline_mode = #tpu.pipeline_mode<synchronous>, transform_indices = @transform_4, window_bounds = array<i64: 20, 1>}, {pipeline_mode = #tpu.pipeline_mode<synchronous>, transform_indices = @transform_5, window_bounds = array<i64: 20, 20>}, {pipeline_mode = #tpu.pipeline_mode<synchronous>, transform_indices = @transform_6, window_bounds = array<i64: 20, 1>}, {pipeline_mode = #tpu.pipeline_mode<synchronous>, transform_indices = @transform_7, window_bounds = array<i64: 20, 20>}, {pipeline_mode = #tpu.pipeline_mode<synchronous>, transform_indices = @transform_8, window_bounds = array<i64: 20, 1>}, {pipeline_mode = #tpu.pipeline_mode<synchronous>, transform_indices = @transform_9, window_bounds = array<i64: 2, 20>}, {pipeline_mode = #tpu.pipeline_mode<synchronous>, transform_indices = @transform_10, window_bounds = array<i64: 2, 1>}, {transform_indices = @transform_11, window_bounds = array<i64: 2, 128>}]} {
    %c0 = arith.constant 0 : index
    %c0_0 = arith.constant 0 : index
    %0 = vector.load %arg1[%c0, %c0_0] : memref<128x4xf32, #tpu.memory_space<vmem>>, vector<128x4xf32>
    %1 = arith.truncf %0 : vector<128x4xf32> to vector<128x4xbf16>
    %c0_1 = arith.constant 0 : index
    %c0_2 = arith.constant 0 : index
    %2 = vector.load %arg2[%c0_1, %c0_2] : memref<20x4xf32, #tpu.memory_space<vmem>>, vector<20x4xf32>
    %3 = arith.truncf %2 : vector<20x4xf32> to vector<20x4xbf16>
    %cst = arith.constant dense<0.000000e+00> : vector<20x128xf32>
    %4 = tpu.matmul %3, %1, %cst {dimension_numbers = #tpu.dot_dimension_numbers<[1], [1], [0], [0], [0, 0, 1, 0], [], []>} : vector<20x4xbf16>, vector<128x4xbf16>, vector<20x128xf32> -> vector<20x128xf32>
    %c0_3 = arith.constant 0 : index
    %c0_4 = arith.constant 0 : index
    %5 = vector.load %arg3[%c0_3, %c0_4] : memref<20x1xf32, #tpu.memory_space<vmem>>, vector<20x1xf32>
    %6 = vector.broadcast %5 : vector<20x1xf32> to vector<20x128xf32>
    %7 = arith.addf %4, %6 : vector<20x128xf32>
    %cst_5 = arith.constant 0.000000e+00 : f32
    %8 = vector.broadcast %cst_5 : f32 to vector<20x128xf32>
    %9 = arith.maximumf %7, %8 : vector<20x128xf32>
    %c0_6 = arith.constant 0 : index
    %c0_7 = arith.constant 0 : index
    %10 = vector.load %arg4[%c0_6, %c0_7] : memref<20x20xf32, #tpu.memory_space<vmem>>, vector<20x20xf32>
    %11 = arith.truncf %10 : vector<20x20xf32> to vector<20x20xbf16>
    %12 = arith.truncf %9 : vector<20x128xf32> to vector<20x128xbf16>
    %cst_8 = arith.constant dense<0.000000e+00> : vector<20x128xf32>
    %13 = tpu.matmul %11, %12, %cst_8 {dimension_numbers = #tpu.dot_dimension_numbers<[1], [0], [0], [1], [0, 0, 1, 1], [], []>} : vector<20x20xbf16>, vector<20x128xbf16>, vector<20x128xf32> -> vector<20x128xf32>
    %c0_9 = arith.constant 0 : index
    %c0_10 = arith.constant 0 : index
    %14 = vector.load %arg5[%c0_9, %c0_10] : memref<20x1xf32, #tpu.memory_space<vmem>>, vector<20x1xf32>
    %15 = vector.broadcast %14 : vector<20x1xf32> to vector<20x128xf32>
    %16 = arith.addf %13, %15 : vector<20x128xf32>
    %cst_11 = arith.constant 0.000000e+00 : f32
    %17 = vector.broadcast %cst_11 : f32 to vector<20x128xf32>
    %18 = arith.maximumf %16, %17 : vector<20x128xf32>
    %c0_12 = arith.constant 0 : index
    %c0_13 = arith.constant 0 : index
    %19 = vector.load %arg6[%c0_12, %c0_13] : memref<20x20xf32, #tpu.memory_space<vmem>>, vector<20x20xf32>
    %20 = arith.truncf %19 : vector<20x20xf32> to vector<20x20xbf16>
    %21 = arith.truncf %18 : vector<20x128xf32> to vector<20x128xbf16>
    %cst_14 = arith.constant dense<0.000000e+00> : vector<20x128xf32>
    %22 = tpu.matmul %20, %21, %cst_14 {dimension_numbers = #tpu.dot_dimension_numbers<[1], [0], [0], [1], [0, 0, 1, 1], [], []>} : vector<20x20xbf16>, vector<20x128xbf16>, vector<20x128xf32> -> vector<20x128xf32>
    %c0_15 = arith.constant 0 : index
    %c0_16 = arith.constant 0 : index
    %23 = vector.load %arg7[%c0_15, %c0_16] : memref<20x1xf32, #tpu.memory_space<vmem>>, vector<20x1xf32>
    %24 = vector.broadcast %23 : vector<20x1xf32> to vector<20x128xf32>
    %25 = arith.addf %22, %24 : vector<20x128xf32>
    %cst_17 = arith.constant 0.000000e+00 : f32
    %26 = vector.broadcast %cst_17 : f32 to vector<20x128xf32>
    %27 = arith.maximumf %25, %26 : vector<20x128xf32>
    %c0_18 = arith.constant 0 : index
    %c0_19 = arith.constant 0 : index
    %28 = vector.load %arg8[%c0_18, %c0_19] : memref<20x20xf32, #tpu.memory_space<vmem>>, vector<20x20xf32>
    %29 = arith.truncf %28 : vector<20x20xf32> to vector<20x20xbf16>
    %30 = arith.truncf %27 : vector<20x128xf32> to vector<20x128xbf16>
    %cst_20 = arith.constant dense<0.000000e+00> : vector<20x128xf32>
    %31 = tpu.matmul %29, %30, %cst_20 {dimension_numbers = #tpu.dot_dimension_numbers<[1], [0], [0], [1], [0, 0, 1, 1], [], []>} : vector<20x20xbf16>, vector<20x128xbf16>, vector<20x128xf32> -> vector<20x128xf32>
    %c0_21 = arith.constant 0 : index
    %c0_22 = arith.constant 0 : index
    %32 = vector.load %arg9[%c0_21, %c0_22] : memref<20x1xf32, #tpu.memory_space<vmem>>, vector<20x1xf32>
    %33 = vector.broadcast %32 : vector<20x1xf32> to vector<20x128xf32>
    %34 = arith.addf %31, %33 : vector<20x128xf32>
    %cst_23 = arith.constant 0.000000e+00 : f32
    %35 = vector.broadcast %cst_23 : f32 to vector<20x128xf32>
    %36 = arith.maximumf %34, %35 : vector<20x128xf32>
    %c0_24 = arith.constant 0 : index
    %c0_25 = arith.constant 0 : index
    %37 = vector.load %arg10[%c0_24, %c0_25] : memref<2x20xf32, #tpu.memory_space<vmem>>, vector<2x20xf32>
    %38 = arith.truncf %37 : vector<2x20xf32> to vector<2x20xbf16>
    %39 = arith.truncf %36 : vector<20x128xf32> to vector<20x128xbf16>
    %cst_26 = arith.constant dense<0.000000e+00> : vector<2x128xf32>
    %40 = tpu.matmul %38, %39, %cst_26 {dimension_numbers = #tpu.dot_dimension_numbers<[1], [0], [0], [1], [0, 0, 1, 1], [], []>} : vector<2x20xbf16>, vector<20x128xbf16>, vector<2x128xf32> -> vector<2x128xf32>
    %c0_27 = arith.constant 0 : index
    %c0_28 = arith.constant 0 : index
    %41 = vector.load %arg11[%c0_27, %c0_28] : memref<2x1xf32, #tpu.memory_space<vmem>>, vector<2x1xf32>
    %42 = vector.broadcast %41 : vector<2x1xf32> to vector<2x128xf32>
    %43 = arith.addf %40, %42 : vector<2x128xf32>
    %c0_29 = arith.constant 0 : index
    %c0_30 = arith.constant 0 : index
    %44 = vector.load %arg12[%c0_29, %c0_30] : memref<2x128xf32, #tpu.memory_space<vmem>>, vector<2x128xf32>
    tpu.vector_store %arg12[%c0_29, %c0_30], %43 {strides = array<i32>} : memref<2x128xf32, #tpu.memory_space<vmem>>, vector<2x128xf32>,
    return
  }
  func.func @transform_0(%arg0: i32) -> (i32, i32) {
    %c0_i32 = arith.constant 0 : i32
    %c0_i32_0 = arith.constant 0 : i32
    return %arg0, %c0_i32 : i32, i32
  }
  func.func @transform_1(%arg0: i32) -> (i32, i32) {
    %c0_i32 = arith.constant 0 : i32
    %c0_i32_0 = arith.constant 0 : i32
    %c0_i32_1 = arith.constant 0 : i32
    return %c0_i32, %c0_i32_0 : i32, i32
  }
  func.func @transform_2(%arg0: i32) -> (i32, i32) {
    %c0_i32 = arith.constant 0 : i32
    %c0_i32_0 = arith.constant 0 : i32
    %c0_i32_1 = arith.constant 0 : i32
    return %c0_i32, %c0_i32_0 : i32, i32
  }
  func.func @transform_3(%arg0: i32) -> (i32, i32) {
    %c0_i32 = arith.constant 0 : i32
    %c0_i32_0 = arith.constant 0 : i32
    %c0_i32_1 = arith.constant 0 : i32
    return %c0_i32, %c0_i32_0 : i32, i32
  }
  func.func @transform_4(%arg0: i32) -> (i32, i32) {
    %c0_i32 = arith.constant 0 : i32
    %c0_i32_0 = arith.constant 0 : i32
    %c0_i32_1 = arith.constant 0 : i32
    return %c0_i32, %c0_i32_0 : i32, i32
  }
  func.func @transform_5(%arg0: i32) -> (i32, i32) {
    %c0_i32 = arith.constant 0 : i32
    %c0_i32_0 = arith.constant 0 : i32
    %c0_i32_1 = arith.constant 0 : i32
    return %c0_i32, %c0_i32_0 : i32, i32
  }
  func.func @transform_6(%arg0: i32) -> (i32, i32) {
    %c0_i32 = arith.constant 0 : i32
    %c0_i32_0 = arith.constant 0 : i32
    %c0_i32_1 = arith.constant 0 : i32
    return %c0_i32, %c0_i32_0 : i32, i32
  }
  func.func @transform_7(%arg0: i32) -> (i32, i32) {
    %c0_i32 = arith.constant 0 : i32
    %c0_i32_0 = arith.constant 0 : i32
    %c0_i32_1 = arith.constant 0 : i32
    return %c0_i32, %c0_i32_0 : i32, i32
  }
  func.func @transform_8(%arg0: i32) -> (i32, i32) {
    %c0_i32 = arith.constant 0 : i32
    %c0_i32_0 = arith.constant 0 : i32
    %c0_i32_1 = arith.constant 0 : i32
    return %c0_i32, %c0_i32_0 : i32, i32
  }
  func.func @transform_9(%arg0: i32) -> (i32, i32) {
    %c0_i32 = arith.constant 0 : i32
    %c0_i32_0 = arith.constant 0 : i32
    %c0_i32_1 = arith.constant 0 : i32
    return %c0_i32, %c0_i32_0 : i32, i32
  }
  func.func @transform_10(%arg0: i32) -> (i32, i32) {
    %c0_i32 = arith.constant 0 : i32
    %c0_i32_0 = arith.constant 0 : i32
    %c0_i32_1 = arith.constant 0 : i32
    return %c0_i32, %c0_i32_0 : i32, i32
  }
  func.func @transform_11(%arg0: i32) -> (i32, i32) {
    %c0_i32 = arith.constant 0 : i32
    %c0_i32_0 = arith.constant 0 : i32
    return %c0_i32, %arg0 : i32, i32
  }
}

</mosaic_0001>

<llo_original>
// kernel: mlp_forward.1
$region0: #{mlp_forward.1}
  #allocation0 [shape = 'u32[]', space=smem, size = 0x4, offset = 0x4, fixed_abs, tag = 'smem constant byte address 0x4 - core index']
  #allocation1 [shape = 'u32[144,128]{1,0:T(1,128)}', space=vmem, size = 0x12000, scoped, tag = 'internal scratch']
  %s0 = inlined_call_operand.vmem [shape: f32[200,4], index: 0, kind: input, shape index: {}]
  %s1 = inlined_call_operand.vmem [shape: f32[20,4], index: 1, kind: input, shape index: {}]
  %s2 = inlined_call_operand.vmem [shape: f32[20,1], index: 2, kind: input, shape index: {}]
  %s3 = inlined_call_operand.vmem [shape: f32[20,20], index: 3, kind: input, shape index: {}]
  %s4 = inlined_call_operand.vmem [shape: f32[20,1], index: 4, kind: input, shape index: {}]
  %s5 = inlined_call_operand.vmem [shape: f32[20,20], index: 5, kind: input, shape index: {}]
  %s6 = inlined_call_operand.vmem [shape: f32[20,1], index: 6, kind: input, shape index: {}]
  %s7 = inlined_call_operand.vmem [shape: f32[20,20], index: 7, kind: input, shape index: {}]
  %s8 = inlined_call_operand.vmem [shape: f32[20,1], index: 8, kind: input, shape index: {}]
  %s9 = inlined_call_operand.vmem [shape: f32[2,20], index: 9, kind: input, shape index: {}]
  %s10 = inlined_call_operand.vmem [shape: f32[2,1], index: 10, kind: input, shape index: {}]
  %s11 = inlined_call_operand.hbm [shape: f32[2,200], index: 11, kind: output, shape index: {}]
  %s12 = sld [smem:[#allocation0]]
  $region77: #{mlp_forward.1} parent=0
    _
  %s14 = ssub.s32 1, %s12
  %s15 = scalar_select 0, %s14, %s12
  $region1: #{mlp_forward.1} parent=0
    #allocation2 [shape = 'u8[2048]{0}', space=vmem, size = 0x800, scoped, tag = 'output window, operand 0']
    #allocation3 [shape = 's32[2]{0}', space=sflag, size = 0x8, scoped, tag = 'scoped memory for mlp_forward.1']
    %16 = vsyncpa [#allocation3], 0
    %s17 = scalar_lea.sflag [#allocation3], 1
    %18 = vsyncpa %s17, 0
    loop: start=0, step=1, limit=4
    $region2: #{mlp_forward.1} parent=1 // loop_pre_header
      _
    $region3: #{mlp_forward.1} parent=1 // loop_header
      %s20 = sphi 0, %s24
      %p21 = scmp.ge.s32.totalorder %s20, 4
      %s30 = sphi 0, %s32
      %s33 = sphi 0, %s30
      %s34 = sphi 0, %s33
      %s50 = sphi 0, %s34
      %s54 = sphi 0, %s54
      %s56 = sphi 0, %s54
      %s57 = sphi 0, %s56
      %s71 = sphi 0, %s57
      %s75 = sphi 0, %s75
      %s77 = sphi 0, %s75
      %s78 = sphi 0, %s77
      %s92 = sphi 0, %s78
      %s96 = sphi 0, %s96
      %s98 = sphi 0, %s96
      %s99 = sphi 0, %s98
      %s113 = sphi 0, %s99
      %s117 = sphi 0, %s117
      %s119 = sphi 0, %s117
      %s120 = sphi 0, %s119
      %s134 = sphi 0, %s120
      %s138 = sphi 0, %s138
      %s140 = sphi 0, %s138
      %s141 = sphi 0, %s140
      %s155 = sphi 0, %s141
      %s159 = sphi 0, %s159
      %s161 = sphi 0, %s159
      %s162 = sphi 0, %s161
      %s176 = sphi 0, %s162
      %s180 = sphi 0, %s180
      %s182 = sphi 0, %s180
      %s183 = sphi 0, %s182
      %s197 = sphi 0, %s183
      %s201 = sphi 0, %s201
      %s203 = sphi 0, %s201
      %s204 = sphi 0, %s203
      %s218 = sphi 0, %s204
      %s222 = sphi 0, %s222
      %s224 = sphi 0, %s222
      %s225 = sphi 0, %s224
      %s239 = sphi 0, %s225
      %s243 = sphi 0, %s243
      %s245 = sphi 0, %s243
      %s246 = sphi 0, %s245
      %s260 = sphi 0, %s246
      %s266 = sphi 0, %s268
      %s269 = sphi 0, %s266
      %s270 = sphi 0, %s269
      %s286 = sphi 0, %s270
    $region4: #{mlp_forward.1} parent=1 // loop_header_branch
      %23 = sbr.rel (%p21) target = $region8
    $region5: #{mlp_forward.1} parent=1 // loop_body
      %s25 = ssub.s32 %s20, 1
      %s26 = ssub.s32 %s20, 2
      %s27 = sadd.s32 %s20, 1
      %s28 = ssub.s32 %s20, %s27
      %p29 = scmp.eq.s32.totalorder %s28, 0
      %s31 = sadd.s32 %s30, 1
      %s32 = scalar_select %p29, %s30, %s31
      %p35 = pneg %p29
      %p36 = scmp.eq.s32.totalorder %s20, 1
      %p37 = por %p35, %p36
      %p38 = scmp.ne.s32.totalorder %s30, %s33
      %p39 = scmp.eq.s32.totalorder %s20, 0
      %p40 = por %p38, %p39
      %p41 = scmp.ne.s32.totalorder %s30, %s33
      %p42 = scmp.eq.s32.totalorder %s25, 1
      %p43 = por %p41, %p42
      %p44 = scmp.ne.s32.totalorder %s33, %s34
      %p45 = scmp.eq.s32.totalorder %s25, 0
      %p46 = por %p44, %p45
      %p47 = scmp.ne.s32.totalorder %s33, %s34
      %p48 = scmp.eq.s32.totalorder %s26, 1
      %p49 = por %p47, %p48
      %p51 = scmp.ne.s32.totalorder %s34, %s50
      %p52 = scmp.eq.s32.totalorder %s26, 0
      %p53 = por %p51, %p52
      %s55 = sadd.s32 %s54, 1
      %p58 = scmp.eq.s32.totalorder %s20, 1
      %p59 = scmp.ne.s32.totalorder %s54, %s56
      %p60 = scmp.eq.s32.totalorder %s20, 0
      %p61 = por %p59, %p60
      %p62 = scmp.ne.s32.totalorder %s54, %s56
      %p63 = scmp.eq.s32.totalorder %s25, 1
      %p64 = por %p62, %p63
      %p65 = scmp.ne.s32.totalorder %s56, %s57
      %p66 = scmp.eq.s32.totalorder %s25, 0
      %p67 = por %p65, %p66
      %p68 = scmp.ne.s32.totalorder %s56, %s57
      %p69 = scmp.eq.s32.totalorder %s26, 1
      %p70 = por %p68, %p69
      %p72 = scmp.ne.s32.totalorder %s57, %s71
      %p73 = scmp.eq.s32.totalorder %s26, 0
      %p74 = por %p72, %p73
      %s76 = sadd.s32 %s75, 1
      %p79 = scmp.eq.s32.totalorder %s20, 1
      %p80 = scmp.ne.s32.totalorder %s75, %s77
      %p81 = scmp.eq.s32.totalorder %s20, 0
      %p82 = por %p80, %p81
      %p83 = scmp.ne.s32.totalorder %s75, %s77
      %p84 = scmp.eq.s32.totalorder %s25, 1
      %p85 = por %p83, %p84
      %p86 = scmp.ne.s32.totalorder %s77, %s78
      %p87 = scmp.eq.s32.totalorder %s25, 0
      %p88 = por %p86, %p87
      %p89 = scmp.ne.s32.totalorder %s77, %s78
      %p90 = scmp.eq.s32.totalorder %s26, 1
      %p91 = por %p89, %p90
      %p93 = scmp.ne.s32.totalorder %s78, %s92
      %p94 = scmp.eq.s32.totalorder %s26, 0
      %p95 = por %p93, %p94
      %s97 = sadd.s32 %s96, 1
      %p100 = scmp.eq.s32.totalorder %s20, 1
      %p101 = scmp.ne.s32.totalorder %s96, %s98
      %p102 = scmp.eq.s32.totalorder %s20, 0
      %p103 = por %p101, %p102
      %p104 = scmp.ne.s32.totalorder %s96, %s98
      %p105 = scmp.eq.s32.totalorder %s25, 1
      %p106 = por %p104, %p105
      %p107 = scmp.ne.s32.totalorder %s98, %s99
      %p108 = scmp.eq.s32.totalorder %s25, 0
      %p109 = por %p107, %p108
      %p110 = scmp.ne.s32.totalorder %s98, %s99
      %p111 = scmp.eq.s32.totalorder %s26, 1
      %p112 = por %p110, %p111
      %p114 = scmp.ne.s32.totalorder %s99, %s113
      %p115 = scmp.eq.s32.totalorder %s26, 0
      %p116 = por %p114, %p115
      %s118 = sadd.s32 %s117, 1
      %p121 = scmp.eq.s32.totalorder %s20, 1
      %p122 = scmp.ne.s32.totalorder %s117, %s119
      %p123 = scmp.eq.s32.totalorder %s20, 0
      %p124 = por %p122, %p123
      %p125 = scmp.ne.s32.totalorder %s117, %s119
      %p126 = scmp.eq.s32.totalorder %s25, 1
      %p127 = por %p125, %p126
      %p128 = scmp.ne.s32.totalorder %s119, %s120
      %p129 = scmp.eq.s32.totalorder %s25, 0
      %p130 = por %p128, %p129
      %p131 = scmp.ne.s32.totalorder %s119, %s120
      %p132 = scmp.eq.s32.totalorder %s26, 1
      %p133 = por %p131, %p132
      %p135 = scmp.ne.s32.totalorder %s120, %s134
      %p136 = scmp.eq.s32.totalorder %s26, 0
      %p137 = por %p135, %p136
      %s139 = sadd.s32 %s138, 1
      %p142 = scmp.eq.s32.totalorder %s20, 1
      %p143 = scmp.ne.s32.totalorder %s138, %s140
      %p144 = scmp.eq.s32.totalorder %s20, 0
      %p145 = por %p143, %p144
      %p146 = scmp.ne.s32.totalorder %s138, %s140
      %p147 = scmp.eq.s32.totalorder %s25, 1
      %p148 = por %p146, %p147
      %p149 = scmp.ne.s32.totalorder %s140, %s141
      %p150 = scmp.eq.s32.totalorder %s25, 0
      %p151 = por %p149, %p150
      %p152 = scmp.ne.s32.totalorder %s140, %s141
      %p153 = scmp.eq.s32.totalorder %s26, 1
      %p154 = por %p152, %p153
      %p156 = scmp.ne.s32.totalorder %s141, %s155
      %p157 = scmp.eq.s32.totalorder %s26, 0
      %p158 = por %p156, %p157
      %s160 = sadd.s32 %s159, 1
      %p163 = scmp.eq.s32.totalorder %s20, 1
      %p164 = scmp.ne.s32.totalorder %s159, %s161
      %p165 = scmp.eq.s32.totalorder %s20, 0
      %p166 = por %p164, %p165
      %p167 = scmp.ne.s32.totalorder %s159, %s161
      %p168 = scmp.eq.s32.totalorder %s25, 1
      %p169 = por %p167, %p168
      %p170 = scmp.ne.s32.totalorder %s161, %s162
      %p171 = scmp.eq.s32.totalorder %s25, 0
      %p172 = por %p170, %p171
      %p173 = scmp.ne.s32.totalorder %s161, %s162
      %p174 = scmp.eq.s32.totalorder %s26, 1
      %p175 = por %p173, %p174
      %p177 = scmp.ne.s32.totalorder %s162, %s176
      %p178 = scmp.eq.s32.totalorder %s26, 0
      %p179 = por %p177, %p178
      %s181 = sadd.s32 %s180, 1
      %p184 = scmp.eq.s32.totalorder %s20, 1
      %p185 = scmp.ne.s32.totalorder %s180, %s182
      %p186 = scmp.eq.s32.totalorder %s20, 0
      %p187 = por %p185, %p186
      %p188 = scmp.ne.s32.totalorder %s180, %s182
      %p189 = scmp.eq.s32.totalorder %s25, 1
      %p190 = por %p188, %p189
      %p191 = scmp.ne.s32.totalorder %s182, %s183
      %p192 = scmp.eq.s32.totalorder %s25, 0
      %p193 = por %p191, %p192
      %p194 = scmp.ne.s32.totalorder %s182, %s183
      %p195 = scmp.eq.s32.totalorder %s26, 1
      %p196 = por %p194, %p195
      %p198 = scmp.ne.s32.totalorder %s183, %s197
      %p199 = scmp.eq.s32.totalorder %s26, 0
      %p200 = por %p198, %p199
      %s202 = sadd.s32 %s201, 1
      %p205 = scmp.eq.s32.totalorder %s20, 1
      %p206 = scmp.ne.s32.totalorder %s201, %s203
      %p207 = scmp.eq.s32.totalorder %s20, 0
      %p208 = por %p206, %p207
      %p209 = scmp.ne.s32.totalorder %s201, %s203
      %p210 = scmp.eq.s32.totalorder %s25, 1
      %p211 = por %p209, %p210
      %p212 = scmp.ne.s32.totalorder %s203, %s204
      %p213 = scmp.eq.s32.totalorder %s25, 0
      %p214 = por %p212, %p213
      %p215 = scmp.ne.s32.totalorder %s203, %s204
      %p216 = scmp.eq.s32.totalorder %s26, 1
      %p217 = por %p215, %p216
      %p219 = scmp.ne.s32.totalorder %s204, %s218
      %p220 = scmp.eq.s32.totalorder %s26, 0
      %p221 = por %p219, %p220
      %s223 = sadd.s32 %s222, 1
      %p226 = scmp.eq.s32.totalorder %s20, 1
      %p227 = scmp.ne.s32.totalorder %s222, %s224
      %p228 = scmp.eq.s32.totalorder %s20, 0
      %p229 = por %p227, %p228
      %p230 = scmp.ne.s32.totalorder %s222, %s224
      %p231 = scmp.eq.s32.totalorder %s25, 1
      %p232 = por %p230, %p231
      %p233 = scmp.ne.s32.totalorder %s224, %s225
      %p234 = scmp.eq.s32.totalorder %s25, 0
      %p235 = por %p233, %p234
      %p236 = scmp.ne.s32.totalorder %s224, %s225
      %p237 = scmp.eq.s32.totalorder %s26, 1
      %p238 = por %p236, %p237
      %p240 = scmp.ne.s32.totalorder %s225, %s239
      %p241 = scmp.eq.s32.totalorder %s26, 0
      %p242 = por %p240, %p241
      %s244 = sadd.s32 %s243, 1
      %p247 = scmp.eq.s32.totalorder %s20, 1
      %p248 = scmp.ne.s32.totalorder %s243, %s245
      %p249 = scmp.eq.s32.totalorder %s20, 0
      %p250 = por %p248, %p249
      %p251 = scmp.ne.s32.totalorder %s243, %s245
      %p252 = scmp.eq.s32.totalorder %s25, 1
      %p253 = por %p251, %p252
      %p254 = scmp.ne.s32.totalorder %s245, %s246
      %p255 = scmp.eq.s32.totalorder %s25, 0
      %p256 = por %p254, %p255
      %p257 = scmp.ne.s32.totalorder %s245, %s246
      %p258 = scmp.eq.s32.totalorder %s26, 1
      %p259 = por %p257, %p258
      %p261 = scmp.ne.s32.totalorder %s246, %s260
      %p262 = scmp.eq.s32.totalorder %s26, 0
      %p263 = por %p261, %p262
      %s264 = ssub.s32 %s20, %s27
      %p265 = scmp.eq.s32.totalorder %s264, 0
      %s267 = sadd.s32 %s266, 1
      %s268 = scalar_select %p265, %s266, %s267
      %p271 = pneg %p265
      %p272 = scmp.eq.s32.totalorder %s20, 1
      %p273 = por %p271, %p272
      %p274 = scmp.ne.s32.totalorder %s266, %s269
      %p275 = scmp.eq.s32.totalorder %s20, 0
      %p276 = por %p274, %p275
      %p277 = scmp.ne.s32.totalorder %s266, %s269
      %p278 = scmp.eq.s32.totalorder %s25, 1
      %p279 = por %p277, %p278
      %p280 = scmp.ne.s32.totalorder %s269, %s270
      %p281 = scmp.eq.s32.totalorder %s25, 0
      %p282 = por %p280, %p281
      %p283 = scmp.ne.s32.totalorder %s269, %s270
      %p284 = scmp.eq.s32.totalorder %s26, 1
      %p285 = por %p283, %p284
      %p287 = scmp.ne.s32.totalorder %s270, %s286
      %p288 = scmp.eq.s32.totalorder %s26, 0
      %p289 = por %p287, %p288
      %p290 = scmp.le.s32.totalorder 1, %s20
      %p291 = scmp.lt.s32.totalorder %s20, 3
      %p292 = pnand %p290, %p291
      %p293 = pneg %p292
      // Predicated region
      $region9: #{mlp_forward.1} parent=5 // pred_check
        _
      $region10: #{mlp_forward.1} parent=5 // pred_check_branch
        %295 = sbr.rel (%p292) target = $region12
      $region11: #{mlp_forward.1} parent=5 // pred_region
        %s296 = ssub.s32 %s20, 1
        // Predicated region
        $region13: #{mlp_forward.1} parent=11 // pred_check
          %p297 = pneg %p67
        $region14: #{mlp_forward.1} parent=11 // pred_check_branch
          %299 = sbr.rel (%p297) target = $region16
        $region15: #{mlp_forward.1} parent=11 // pred_region
          _
        $region16: #{mlp_forward.1} parent=11 // pred_fallthru
          _
        // Predicated region
        $region17: #{mlp_forward.1} parent=11 // pred_check
          %p300 = pneg %p88
        $region18: #{mlp_forward.1} parent=11 // pred_check_branch
          %302 = sbr.rel (%p300) target = $region20
        $region19: #{mlp_forward.1} parent=11 // pred_region
          _
        $region20: #{mlp_forward.1} parent=11 // pred_fallthru
          _
        // Predicated region
        $region21: #{mlp_forward.1} parent=11 // pred_check
          %p303 = pneg %p109
        $region22: #{mlp_forward.1} parent=11 // pred_check_branch
          %305 = sbr.rel (%p303) target = $region24
        $region23: #{mlp_forward.1} parent=11 // pred_region
          _
        $region24: #{mlp_forward.1} parent=11 // pred_fallthru
          _
        // Predicated region
        $region25: #{mlp_forward.1} parent=11 // pred_check
          %p306 = pneg %p130
        $region26: #{mlp_forward.1} parent=11 // pred_check_branch
          %308 = sbr.rel (%p306) target = $region28
        $region27: #{mlp_forward.1} parent=11 // pred_region
          _
        $region28: #{mlp_forward.1} parent=11 // pred_fallthru
          _
        // Predicated region
        $region29: #{mlp_forward.1} parent=11 // pred_check
          %p309 = pneg %p151
        $region30: #{mlp_forward.1} parent=11 // pred_check_branch
          %311 = sbr.rel (%p309) target = $region32
        $region31: #{mlp_forward.1} parent=11 // pred_region
          _
        $region32: #{mlp_forward.1} parent=11 // pred_fallthru
          _
        // Predicated region
        $region33: #{mlp_forward.1} parent=11 // pred_check
          %p312 = pneg %p172
        $region34: #{mlp_forward.1} parent=11 // pred_check_branch
          %314 = sbr.rel (%p312) target = $region36
        $region35: #{mlp_forward.1} parent=11 // pred_region
          _
        $region36: #{mlp_forward.1} parent=11 // pred_fallthru
          _
        // Predicated region
        $region37: #{mlp_forward.1} parent=11 // pred_check
          %p315 = pneg %p193
        $region38: #{mlp_forward.1} parent=11 // pred_check_branch
          %317 = sbr.rel (%p315) target = $region40
        $region39: #{mlp_forward.1} parent=11 // pred_region
          _
        $region40: #{mlp_forward.1} parent=11 // pred_fallthru
          _
        // Predicated region
        $region41: #{mlp_forward.1} parent=11 // pred_check
          %p318 = pneg %p214
        $region42: #{mlp_forward.1} parent=11 // pred_check_branch
          %320 = sbr.rel (%p318) target = $region44
        $region43: #{mlp_forward.1} parent=11 // pred_region
          _
        $region44: #{mlp_forward.1} parent=11 // pred_fallthru
          _
        // Predicated region
        $region45: #{mlp_forward.1} parent=11 // pred_check
          %p321 = pneg %p235
        $region46: #{mlp_forward.1} parent=11 // pred_check_branch
          %323 = sbr.rel (%p321) target = $region48
        $region47: #{mlp_forward.1} parent=11 // pred_region
          _
        $region48: #{mlp_forward.1} parent=11 // pred_fallthru
          _
        // Predicated region
        $region49: #{mlp_forward.1} parent=11 // pred_check
          %p324 = pneg %p256
        $region50: #{mlp_forward.1} parent=11 // pred_check_branch
          %326 = sbr.rel (%p324) target = $region52
        $region51: #{mlp_forward.1} parent=11 // pred_region
          _
        $region52: #{mlp_forward.1} parent=11 // pred_fallthru
          _
      $region12: #{mlp_forward.1} parent=5 // pred_fallthru
        _
      %p327 = scmp.lt.s32.totalorder %s20, 2
      // Predicated region
      $region53: #{mlp_forward.1} parent=5 // pred_check
        %p328 = pneg %p327
      $region54: #{mlp_forward.1} parent=5 // pred_check_branch
        %330 = sbr.rel (%p328) target = $region56
      $region55: #{mlp_forward.1} parent=5 // pred_region
        // Predicated region
        $region57: #{mlp_forward.1} parent=55 // pred_check
          %p331 = pneg %p40
        $region58: #{mlp_forward.1} parent=55 // pred_check_branch
          %333 = sbr.rel (%p331) target = $region60
        $region59: #{mlp_forward.1} parent=55 // pred_region
          %s334 = smul.u32 16, %s20
          %s335 = ssub.s32 25, %s334
          %p336 = scmp.lt.s32.totalorder %s335, 16
          %s337 = scalar_select %p336, %s335, 16
          %s338 = smul.u32 128, %s337
          %p339 = scmp.lt.s32.totalorder %s334, 24
          %s340 = scalar_select %p339, %s334, 24
          %s341 = smul.addr %s340, 8
          %s342 = scalar_lea.vmem %s0, %s341
          %s343 = smul.u32 16, %s20
          %s344 = ssub.s32 25, %s343
          %p345 = scmp.lt.s32.totalorder %s344, 16
          %s346 = scalar_select %p345, %s344, 16
          %s347 = smul.u32 128, %s346
        $region60: #{mlp_forward.1} parent=55 // pred_fallthru
          _
      $region56: #{mlp_forward.1} parent=5 // pred_fallthru
        _
      %p348 = scmp.le.s32.totalorder 1, %s20
      %p349 = scmp.lt.s32.totalorder %s20, 3
      %p350 = pnand %p348, %p349
      %p351 = pneg %p350
      // Predicated region
      $region61: #{mlp_forward.1} parent=5 // pred_check
        _
      $region62: #{mlp_forward.1} parent=5 // pred_check_branch
        %353 = sbr.rel (%p350) target = $region64
      $region63: #{mlp_forward.1} parent=5 // pred_region
        %s354 = ssub.s32 %s20, 1
        %s355 = smul.u32 16, %s25
        %s356 = ssub.s32 25, %s355
        %p357 = scmp.lt.s32.totalorder %s356, 16
        %s358 = scalar_select %p357, %s356, 16
        %s359 = smul.u32 128, %s358
        %p360 = scmp.lt.s32.totalorder %s355, 24
        %s361 = scalar_select %p360, %s355, 24
        %s362 = smul.addr %s361, 8
        %s363 = scalar_lea.vmem %s0, %s362
        %p364 = pneg %p46
        %p365 = pneg %p43
        %p366 = pneg %p67
        %p367 = pneg %p64
        %p368 = pneg %p88
        %p369 = pneg %p85
        %p370 = pneg %p109
        %p371 = pneg %p106
        %p372 = pneg %p130
        %p373 = pneg %p127
        %p374 = pneg %p151
        %p375 = pneg %p148
        %p376 = pneg %p172
        %p377 = pneg %p169
        %p378 = pneg %p193
        %p379 = pneg %p190
        %p380 = pneg %p214
        %p381 = pneg %p211
        %p382 = pneg %p235
        %p383 = pneg %p232
        %p384 = pneg %p256
        %p385 = pneg %p253
        %p386 = pneg %p282
        %p387 = pneg %p279
        %s388 = sand.u32 %s269, 1
        %s389 = scalar_lea.sflag [#allocation3], %s388
        %s390 = sand.u32 %s269, 1
        %s391 = smul.addr %s390, 2
        %s392 = scalar_lea.vmem [#allocation2], %s391
        %s393 = smul.u32 16, %s25
        %s394 = ssub.s32 25, %s393
        %p395 = scmp.lt.s32.totalorder %s394, 16
        %s396 = scalar_select %p395, %s394, 16
        %s397 = smul.u32 128, %s396
        %p398 = scmp.lt.s32.totalorder %s393, 24
        %s399 = scalar_select %p398, %s393, 24
        %s400 = smul.addr %s399, 8
        %s401 = scalar_lea.vmem %s0, %s400
        %s402 = smul.u32 16, %s25
        %s403 = ssub.s32 25, %s402
        %p404 = scmp.lt.s32.totalorder %s403, 16
        %s405 = scalar_select %p404, %s403, 16
        %s406 = smul.u32 128, %s405
        %v408 = vld [vmem:[%s401] sm:$0xff]
        %v409 = vld [vmem:[%s401 + $0x8] sm:$0xff]
        %v410 = vld [vmem:[%s401 + $0x10] sm:$0xff]
        %v411 = vld [vmem:[%s401 + $0x18] sm:$0xff]
        %v412 = vld [vmem:[%s401 + $0x20] sm:$0xff]
        %v413 = vld [vmem:[%s401 + $0x28] sm:$0xff]
        %v414 = vld [vmem:[%s401 + $0x30] sm:$0xff]
        %v415 = vld [vmem:[%s401 + $0x38] sm:$0xff]
        %v416 = vld [vmem:[%s401 + $0x40] sm:$0xff]
        %v417 = vld [vmem:[%s401 + $0x48] sm:$0xff]
        %v418 = vld [vmem:[%s401 + $0x50] sm:$0xff]
        %v419 = vld [vmem:[%s401 + $0x58] sm:$0xff]
        %v420 = vld [vmem:[%s401 + $0x60] sm:$0xff]
        %v421 = vld [vmem:[%s401 + $0x68] sm:$0xff]
        %v422 = vld [vmem:[%s401 + $0x70] sm:$0xff]
        %v423 = vld [vmem:[%s401 + $0x78] sm:$0xff]
        %v424 = vpack.c.bf16 %v409, %v408
        %v425 = vpack.c.bf16 %v411, %v410
        %v426 = vpack.c.bf16 %v413, %v412
        %v427 = vpack.c.bf16 %v415, %v414
        %v428 = vpack.c.bf16 %v417, %v416
        %v429 = vpack.c.bf16 %v419, %v418
        %v430 = vpack.c.bf16 %v421, %v420
        %v431 = vpack.c.bf16 %v423, %v422
        %v432 = vld [vmem:[%s1] sm:$0xff]
        %v433 = vld [vmem:[%s1 + $0x8] sm:$0xff]
        %v434 = vld [vmem:[%s1 + $0x10] sm:$0xf]
        %v435 = vpack.c.bf16 %v433, %v432
        %v436 = vpack.c.bf16 %v434, %v434
        %v437 = vld [vmem:[%s2] sm:$0xff]
        %v438 = vld [vmem:[%s2 + $0x8] sm:$0xff]
        %v439 = vld [vmem:[%s2 + $0x10] sm:$0xf]
        %441 = vset.pattern.permute.xlu0 0
        %442 = vperm.xlu0 %441, %v437
        %v443 = vpop.permute.xlu0 %442
        %446 = vset.pattern.permute.xlu0 0
        %447 = vperm.xlu0 %446, %v438
        %v448 = vpop.permute.xlu0 %447
        %451 = vset.pattern.permute.xlu0 0
        %452 = vperm.xlu0 %451, %v439
        %v453 = vpop.permute.xlu0 %452
        %vm455 = vcmask 31744
        %v457 = vsel %vm455, %v435, 0
        %v460 = vsel %vm455, %v436, 0
        %v463 = vsel %vm455, %v424, 0
        %v466 = vsel %vm455, %v425, 0
        %v469 = vsel %vm455, %v426, 0
        %v472 = vsel %vm455, %v427, 0
        %v475 = vsel %vm455, %v428, 0
        %v478 = vsel %vm455, %v429, 0
        %v481 = vsel %vm455, %v430, 0
        %v484 = vsel %vm455, %v431, 0
        %486 = vmatprep.subr.bf16.mxu0 0
        %487 = vmatpush1.bf16.xpose.msra.mxu0 %v484
        %488 = vmatprep.subr.bf16.mxu0 0
        %489 = vmatpush1.bf16.xpose.msra.mxu0 %v481
        %490 = vmatprep.subr.bf16.mxu0 0
        %491 = vmatpush1.bf16.xpose.msra.mxu0 %v478
        %492 = vmatprep.subr.bf16.mxu0 0
        %493 = vmatpush1.bf16.xpose.msra.mxu0 %v475
        %494 = vmatprep.subr.bf16.mxu0 0
        %495 = vmatpush1.bf16.xpose.msra.mxu0 %v472
        %496 = vmatprep.subr.bf16.mxu0 0
        %497 = vmatpush1.bf16.xpose.msra.mxu0 %v469
        %498 = vmatprep.subr.bf16.mxu0 0
        %499 = vmatpush1.bf16.xpose.msra.mxu0 %v466
        %500 = vmatprep.subr.bf16.mxu0 0
        %501 = vmatpush1.bf16.xpose.msra.mxu0 %v463
        %502 = vmatprep.subr.bf16.mxu0 0
        %503 = vmatpush2.bf16.xpose.msra.mxu0 0
        %504 = vmatprep.subr.bf16.mxu0 0
        %505 = vmatpush2.bf16.xpose.msra.mxu0 0
        %506 = vmatprep.subr.bf16.mxu0 0
        %507 = vmatpush2.bf16.xpose.msra.mxu0 0
        %508 = vmatprep.subr.bf16.mxu0 0
        %509 = vmatpush2.bf16.xpose.msra.mxu0 0
        %510 = vmatprep.subr.bf16.mxu0 0
        %511 = vmatpush2.bf16.xpose.msra.mxu0 0
        %512 = vmatprep.subr.bf16.mxu0 0
        %513 = vmatpush2.bf16.xpose.msra.mxu0 0
        %514 = vmatprep.subr.bf16.mxu0 0
        %515 = vmatpush2.bf16.xpose.msra.mxu0 0
        %516 = vmatprep.subr.bf16.mxu0 0
        %517 = vmatpush2.bf16.xpose.msra.mxu0 0
        %518 = vmatprep.mubr.bf16.mxu0 0
        %519 = vmatmul.mubr.bf16.gmra.mxu0 %v457
        %v520 = vpop.f32.mrf.mxu0
        %v521 = vadd.f32 %v443, %v520
        %v522 = vpop.f32.mrf.mxu0
        %v523 = vpop.f32.mrf.mxu0
        %v524 = vadd.f32 %v448, %v523
        %v525 = vpop.f32.mrf.mxu0
        %526 = vmatprep.mubr.bf16.mxu0 0
        %527 = vmatmul.mubr.bf16.gmra.mxu0 %v460
        %v528 = vpop.f32.mrf.mxu0
        %v529 = vadd.f32 %v453, %v528
        %v530 = vpop.f32.mrf.mxu0
        %v531 = vpop.f32.mrf.mxu0
        %v532 = vpop.f32.mrf.mxu0
        %533 = vdwg.mxu0
        %v534 = vmax.f32 %v521, 0.0
        %v535 = vmax.f32 %v524, 0.0
        %v536 = vmax.f32 %v529, 0.0
        %v537 = vld [vmem:[%s3] sm:$0xff]
        %v538 = vld [vmem:[%s3 + $0x8] sm:$0xff]
        %v539 = vld [vmem:[%s3 + $0x10] sm:$0xf]
        %v540 = vpack.c.bf16 %v538, %v537
        %v541 = vpack.c.bf16 %v539, %v539
        %v542 = vpack.c.bf16 %v535, %v534
        %v543 = vpack.c.bf16 %v536, %v536
        %v544 = vld [vmem:[%s4] sm:$0xff]
        %v545 = vld [vmem:[%s4 + $0x8] sm:$0xff]
        %v546 = vld [vmem:[%s4 + $0x10] sm:$0xf]
        %548 = vset.pattern.permute.xlu0 0
        %549 = vperm.xlu0 %548, %v544
        %v550 = vpop.permute.xlu0 %549
        %553 = vset.pattern.permute.xlu0 0
        %554 = vperm.xlu0 %553, %v545
        %v555 = vpop.permute.xlu0 %554
        %558 = vset.pattern.permute.xlu0 0
        %559 = vperm.xlu0 %558, %v546
        %v560 = vpop.permute.xlu0 %559
        %vm562 = vcmask 162816
        %v564 = vsel %vm562, %v540, 0
        %v567 = vsel %vm562, %v541, 0
        %vm569 = vcmask 1041408
        %v571 = vsel %vm569, %v543, 0
        %573 = vmatprep.subr.bf16.mxu0 0
        %574 = vmatpush1.bf16.msra.mxu0 0
        %575 = vmatprep.subr.bf16.mxu0 0
        %576 = vmatpush1.bf16.msra.mxu0 0
        %577 = vmatprep.subr.bf16.mxu0 0
        %578 = vmatpush1.bf16.msra.mxu0 0
        %579 = vmatprep.subr.bf16.mxu0 0
        %580 = vmatpush1.bf16.msra.mxu0 0
        %581 = vmatprep.subr.bf16.mxu0 0
        %582 = vmatpush1.bf16.msra.mxu0 0
        %583 = vmatprep.subr.bf16.mxu0 0
        %584 = vmatpush1.bf16.msra.mxu0 0
        %585 = vmatprep.subr.bf16.mxu0 0
        %586 = vmatpush1.bf16.msra.mxu0 %v571
        %587 = vmatprep.subr.bf16.mxu0 0
        %588 = vmatpush1.bf16.msra.mxu0 %v542
        %589 = vmatprep.subr.bf16.mxu0 0
        %590 = vmatpush2.bf16.msra.mxu0 0
        %591 = vmatprep.subr.bf16.mxu0 0
        %592 = vmatpush2.bf16.msra.mxu0 0
        %593 = vmatprep.subr.bf16.mxu0 0
        %594 = vmatpush2.bf16.msra.mxu0 0
        %595 = vmatprep.subr.bf16.mxu0 0
        %596 = vmatpush2.bf16.msra.mxu0 0
        %597 = vmatprep.subr.bf16.mxu0 0
        %598 = vmatpush2.bf16.msra.mxu0 0
        %599 = vmatprep.subr.bf16.mxu0 0
        %600 = vmatpush2.bf16.msra.mxu0 0
        %601 = vmatprep.subr.bf16.mxu0 0
        %602 = vmatpush2.bf16.msra.mxu0 0
        %603 = vmatprep.subr.bf16.mxu0 0
        %604 = vmatpush2.bf16.msra.mxu0 0
        %605 = vmatprep.mubr.bf16.mxu0 0
        %606 = vmatmul.mubr.bf16.gmra.mxu0 %v564
        %v607 = vpop.f32.mrf.mxu0
        %v608 = vadd.f32 %v550, %v607
        %v609 = vpop.f32.mrf.mxu0
        %v610 = vpop.f32.mrf.mxu0
        %v611 = vadd.f32 %v555, %v610
        %v612 = vpop.f32.mrf.mxu0
        %613 = vmatprep.mubr.bf16.mxu0 0
        %614 = vmatmul.mubr.bf16.gmra.mxu0 %v567
        %v615 = vpop.f32.mrf.mxu0
        %v616 = vadd.f32 %v560, %v615
        %v617 = vpop.f32.mrf.mxu0
        %v618 = vpop.f32.mrf.mxu0
        %v619 = vpop.f32.mrf.mxu0
        %620 = vdwg.mxu0
        %v621 = vmax.f32 %v608, 0.0
        %v622 = vmax.f32 %v611, 0.0
        %v623 = vmax.f32 %v616, 0.0
        %v624 = vld [vmem:[%s5] sm:$0xff]
        %v625 = vld [vmem:[%s5 + $0x8] sm:$0xff]
        %v626 = vld [vmem:[%s5 + $0x10] sm:$0xf]
        %v627 = vpack.c.bf16 %v625, %v624
        %v628 = vpack.c.bf16 %v626, %v626
        %v629 = vpack.c.bf16 %v622, %v621
        %v630 = vpack.c.bf16 %v623, %v623
        %v631 = vld [vmem:[%s6] sm:$0xff]
        %v632 = vld [vmem:[%s6 + $0x8] sm:$0xff]
        %v633 = vld [vmem:[%s6 + $0x10] sm:$0xf]
        %635 = vset.pattern.permute.xlu0 0
        %636 = vperm.xlu0 %635, %v631
        %v637 = vpop.permute.xlu0 %636
        %640 = vset.pattern.permute.xlu0 0
        %641 = vperm.xlu0 %640, %v632
        %v642 = vpop.permute.xlu0 %641
        %645 = vset.pattern.permute.xlu0 0
        %646 = vperm.xlu0 %645, %v633
        %v647 = vpop.permute.xlu0 %646
        %v650 = vsel %vm562, %v627, 0
        %v653 = vsel %vm562, %v628, 0
        %v656 = vsel %vm569, %v630, 0
        %658 = vmatprep.subr.bf16.mxu0 0
        %659 = vmatpush1.bf16.msra.mxu0 0
        %660 = vmatprep.subr.bf16.mxu0 0
        %661 = vmatpush1.bf16.msra.mxu0 0
        %662 = vmatprep.subr.bf16.mxu0 0
        %663 = vmatpush1.bf16.msra.mxu0 0
        %664 = vmatprep.subr.bf16.mxu0 0
        %665 = vmatpush1.bf16.msra.mxu0 0
        %666 = vmatprep.subr.bf16.mxu0 0
        %667 = vmatpush1.bf16.msra.mxu0 0
        %668 = vmatprep.subr.bf16.mxu0 0
        %669 = vmatpush1.bf16.msra.mxu0 0
        %670 = vmatprep.subr.bf16.mxu0 0
        %671 = vmatpush1.bf16.msra.mxu0 %v656
        %672 = vmatprep.subr.bf16.mxu0 0
        %673 = vmatpush1.bf16.msra.mxu0 %v629
        %674 = vmatprep.subr.bf16.mxu0 0
        %675 = vmatpush2.bf16.msra.mxu0 0
        %676 = vmatprep.subr.bf16.mxu0 0
        %677 = vmatpush2.bf16.msra.mxu0 0
        %678 = vmatprep.subr.bf16.mxu0 0
        %679 = vmatpush2.bf16.msra.mxu0 0
        %680 = vmatprep.subr.bf16.mxu0 0
        %681 = vmatpush2.bf16.msra.mxu0 0
        %682 = vmatprep.subr.bf16.mxu0 0
        %683 = vmatpush2.bf16.msra.mxu0 0
        %684 = vmatprep.subr.bf16.mxu0 0
        %685 = vmatpush2.bf16.msra.mxu0 0
        %686 = vmatprep.subr.bf16.mxu0 0
        %687 = vmatpush2.bf16.msra.mxu0 0
        %688 = vmatprep.subr.bf16.mxu0 0
        %689 = vmatpush2.bf16.msra.mxu0 0
        %690 = vmatprep.mubr.bf16.mxu0 0
        %691 = vmatmul.mubr.bf16.gmra.mxu0 %v650
        %v692 = vpop.f32.mrf.mxu0
        %v693 = vadd.f32 %v637, %v692
        %v694 = vpop.f32.mrf.mxu0
        %v695 = vpop.f32.mrf.mxu0
        %v696 = vadd.f32 %v642, %v695
        %v697 = vpop.f32.mrf.mxu0
        %698 = vmatprep.mubr.bf16.mxu0 0
        %699 = vmatmul.mubr.bf16.gmra.mxu0 %v653
        %v700 = vpop.f32.mrf.mxu0
        %v701 = vadd.f32 %v647, %v700
        %v702 = vpop.f32.mrf.mxu0
        %v703 = vpop.f32.mrf.mxu0
        %v704 = vpop.f32.mrf.mxu0
        %705 = vdwg.mxu0
        %v706 = vmax.f32 %v693, 0.0
        %v707 = vmax.f32 %v696, 0.0
        %v708 = vmax.f32 %v701, 0.0
        %v709 = vld [vmem:[%s7] sm:$0xff]
        %v710 = vld [vmem:[%s7 + $0x8] sm:$0xff]
        %v711 = vld [vmem:[%s7 + $0x10] sm:$0xf]
        %v712 = vpack.c.bf16 %v710, %v709
        %v713 = vpack.c.bf16 %v711, %v711
        %v714 = vpack.c.bf16 %v707, %v706
        %v715 = vpack.c.bf16 %v708, %v708
        %v716 = vld [vmem:[%s8] sm:$0xff]
        %v717 = vld [vmem:[%s8 + $0x8] sm:$0xff]
        %v718 = vld [vmem:[%s8 + $0x10] sm:$0xf]
        %720 = vset.pattern.permute.xlu0 0
        %721 = vperm.xlu0 %720, %v716
        %v722 = vpop.permute.xlu0 %721
        %725 = vset.pattern.permute.xlu0 0
        %726 = vperm.xlu0 %725, %v717
        %v727 = vpop.permute.xlu0 %726
        %730 = vset.pattern.permute.xlu0 0
        %731 = vperm.xlu0 %730, %v718
        %v732 = vpop.permute.xlu0 %731
        %v735 = vsel %vm562, %v712, 0
        %v738 = vsel %vm562, %v713, 0
        %v741 = vsel %vm569, %v715, 0
        %743 = vmatprep.subr.bf16.mxu0 0
        %744 = vmatpush1.bf16.msra.mxu0 0
        %745 = vmatprep.subr.bf16.mxu0 0
        %746 = vmatpush1.bf16.msra.mxu0 0
        %747 = vmatprep.subr.bf16.mxu0 0
        %748 = vmatpush1.bf16.msra.mxu0 0
        %749 = vmatprep.subr.bf16.mxu0 0
        %750 = vmatpush1.bf16.msra.mxu0 0
        %751 = vmatprep.subr.bf16.mxu0 0
        %752 = vmatpush1.bf16.msra.mxu0 0
        %753 = vmatprep.subr.bf16.mxu0 0
        %754 = vmatpush1.bf16.msra.mxu0 0
        %755 = vmatprep.subr.bf16.mxu0 0
        %756 = vmatpush1.bf16.msra.mxu0 %v741
        %757 = vmatprep.subr.bf16.mxu0 0
        %758 = vmatpush1.bf16.msra.mxu0 %v714
        %759 = vmatprep.subr.bf16.mxu0 0
        %760 = vmatpush2.bf16.msra.mxu0 0
        %761 = vmatprep.subr.bf16.mxu0 0
        %762 = vmatpush2.bf16.msra.mxu0 0
        %763 = vmatprep.subr.bf16.mxu0 0
        %764 = vmatpush2.bf16.msra.mxu0 0
        %765 = vmatprep.subr.bf16.mxu0 0
        %766 = vmatpush2.bf16.msra.mxu0 0
        %767 = vmatprep.subr.bf16.mxu0 0
        %768 = vmatpush2.bf16.msra.mxu0 0
        %769 = vmatprep.subr.bf16.mxu0 0
        %770 = vmatpush2.bf16.msra.mxu0 0
        %771 = vmatprep.subr.bf16.mxu0 0
        %772 = vmatpush2.bf16.msra.mxu0 0
        %773 = vmatprep.subr.bf16.mxu0 0
        %774 = vmatpush2.bf16.msra.mxu0 0
        %775 = vmatprep.mubr.bf16.mxu0 0
        %776 = vmatmul.mubr.bf16.gmra.mxu0 %v735
        %v777 = vpop.f32.mrf.mxu0
        %v778 = vadd.f32 %v722, %v777
        %v779 = vpop.f32.mrf.mxu0
        %v780 = vpop.f32.mrf.mxu0
        %v781 = vadd.f32 %v727, %v780
        %v782 = vpop.f32.mrf.mxu0
        %783 = vmatprep.mubr.bf16.mxu0 0
        %784 = vmatmul.mubr.bf16.gmra.mxu0 %v738
        %v785 = vpop.f32.mrf.mxu0
        %v786 = vadd.f32 %v732, %v785
        %v787 = vpop.f32.mrf.mxu0
        %v788 = vpop.f32.mrf.mxu0
        %v789 = vpop.f32.mrf.mxu0
        %790 = vdwg.mxu0
        %v791 = vmax.f32 %v778, 0.0
        %v792 = vmax.f32 %v781, 0.0
        %v793 = vmax.f32 %v786, 0.0
        %v794 = vld [vmem:[%s9] sm:$0x3]
        %v795 = vpack.c.bf16 %v794, %v794
        %v796 = vpack.c.bf16 %v792, %v791
        %v797 = vpack.c.bf16 %v793, %v793
        %v798 = vld [vmem:[%s10] sm:$0x3]
        %800 = vset.pattern.permute.xlu0 0
        %801 = vperm.xlu0 %800, %v798
        %v802 = vpop.permute.xlu0 %801
        %v805 = vsel %vm562, %v795, 0
        %v808 = vsel %vm569, %v797, 0
        %810 = vmatprep.subr.bf16.mxu0 0
        %811 = vmatpush1.bf16.msra.mxu0 0
        %812 = vmatprep.subr.bf16.mxu0 0
        %813 = vmatpush1.bf16.msra.mxu0 0
        %814 = vmatprep.subr.bf16.mxu0 0
        %815 = vmatpush1.bf16.msra.mxu0 0
        %816 = vmatprep.subr.bf16.mxu0 0
        %817 = vmatpush1.bf16.msra.mxu0 0
        %818 = vmatprep.subr.bf16.mxu0 0
        %819 = vmatpush1.bf16.msra.mxu0 0
        %820 = vmatprep.subr.bf16.mxu0 0
        %821 = vmatpush1.bf16.msra.mxu0 0
        %822 = vmatprep.subr.bf16.mxu0 0
        %823 = vmatpush1.bf16.msra.mxu0 %v808
        %824 = vmatprep.subr.bf16.mxu0 0
        %825 = vmatpush1.bf16.msra.mxu0 %v796
        %826 = vmatprep.subr.bf16.mxu0 0
        %827 = vmatpush2.bf16.msra.mxu0 0
        %828 = vmatprep.subr.bf16.mxu0 0
        %829 = vmatpush2.bf16.msra.mxu0 0
        %830 = vmatprep.subr.bf16.mxu0 0
        %831 = vmatpush2.bf16.msra.mxu0 0
        %832 = vmatprep.subr.bf16.mxu0 0
        %833 = vmatpush2.bf16.msra.mxu0 0
        %834 = vmatprep.subr.bf16.mxu0 0
        %835 = vmatpush2.bf16.msra.mxu0 0
        %836 = vmatprep.subr.bf16.mxu0 0
        %837 = vmatpush2.bf16.msra.mxu0 0
        %838 = vmatprep.subr.bf16.mxu0 0
        %839 = vmatpush2.bf16.msra.mxu0 0
        %840 = vmatprep.subr.bf16.mxu0 0
        %841 = vmatpush2.bf16.msra.mxu0 0
        %842 = vmatprep.mubr.bf16.mxu0 0
        %843 = vmatmul.mubr.bf16.gmra.mxu0 %v805
        %v844 = vpop.f32.mrf.mxu0
        %v845 = vadd.f32 %v802, %v844
        %v846 = vpop.f32.mrf.mxu0
        %v847 = vpop.f32.mrf.mxu0
        %v848 = vpop.f32.mrf.mxu0
        %849 = vdwg.mxu0
        %850 = vst [vmem:[%s392] sm:$0x3] %v845
        %s851 = sand.u32 %s269, 1
        %s852 = scalar_lea.sflag [#allocation3], %s851
        %s853 = sand.u32 %s269, 1
        %s854 = smul.addr %s853, 2
        %s855 = scalar_lea.vmem [#allocation2], %s854
        // Predicated region
        $region65: #{mlp_forward.1} parent=63 // pred_check
          %p856 = pneg %p279
        $region66: #{mlp_forward.1} parent=63 // pred_check_branch
          %858 = sbr.rel (%p856) target = $region68
        $region67: #{mlp_forward.1} parent=63 // pred_region
          %s860 = ssub.s32 32, 32
          %861 = vsyncadd %s852, %s860
          %s862 = smul.addr %s25, 32
          %s863 = scalar_lea.hbm %s11, %s862
          %s865 = sshll.u32 %s855, 4
          %s866 = int_to_ptr.vmem [resolvable:$true] %s865
          %868 = dma.vmem_to_hbm [thread:$0]  %s866, 32, %s863, %s852
        $region68: #{mlp_forward.1} parent=63 // pred_fallthru
          _
      $region64: #{mlp_forward.1} parent=5 // pred_fallthru
        _
      %p869 = scmp.le.s32.totalorder 2, %s20
      // Predicated region
      $region69: #{mlp_forward.1} parent=5 // pred_check
        %p870 = pneg %p869
      $region70: #{mlp_forward.1} parent=5 // pred_check_branch
        %872 = sbr.rel (%p870) target = $region72
      $region71: #{mlp_forward.1} parent=5 // pred_region
        %s873 = ssub.s32 %s20, 2
        // Predicated region
        $region73: #{mlp_forward.1} parent=71 // pred_check
          %p874 = pneg %p285
        $region74: #{mlp_forward.1} parent=71 // pred_check_branch
          %876 = sbr.rel (%p874) target = $region76
        $region75: #{mlp_forward.1} parent=71 // pred_region
          %s877 = sand.u32 %s270, 1
          %s878 = scalar_lea.sflag [#allocation3], %s877
          %s879 = sand.u32 %s270, 1
          %s880 = smul.addr %s879, 2
          %s881 = scalar_lea.vmem [#allocation2], %s880
          %882 = dma.done %s878, 32
        $region76: #{mlp_forward.1} parent=71 // pred_fallthru
          _
      $region72: #{mlp_forward.1} parent=5 // pred_fallthru
        _
    $region6: #{mlp_forward.1} parent=1 // loop_footer
      %s24 = sadd.s32 1, %s20
    $region7: #{mlp_forward.1} parent=1 // loop_footer_branch
      %19 = sbr.rel target = $region3
    $region8: #{mlp_forward.1} parent=1 // loop_exit
      _
    %883 = vsyncpa [#allocation3], 1
    %s884 = scalar_lea.sflag [#allocation3], 1
    %885 = vsyncpa %s884, 1

</llo_original>
